<compile_context>
chip_gen: v5e
topology: v5e:2x2
jax: 0.10.0
libtpu: 0.0.40
codegen_flags: <defaults>
</compile_context>

<pallas_src>
import jax
import jax.numpy as jnp
from jax.experimental import pallas as pl
from jax.experimental.pallas import tpu as pltpu

# Toy shapes consistent with the module (stand-ins for seq=77, ctx_dim=512, n_cls~100s).
N_CLS = 8        # number of classes
N_CTX = 4        # N_CTX_TEXT context tokens
CTX_DIM = 128    # ln_final width
SEQ = 16         # total prompt length
DTYPE = jnp.bfloat16


def prompt_kernel(prefix_ref, ctx_ref, suffix_ref, out_ref):
    # prefix_ref: (tile_cls, 1, D)        native dtype
    # ctx_ref:    (n_ctx, D)              native dtype (shared across classes, fetched once)
    # suffix_ref: (tile_cls, n_suf, D)    native dtype
    # out_ref:    (tile_cls, seq, D)      native dtype
    tile_cls = out_ref.shape[0]
    n_ctx, dim = ctx_ref.shape
    # Three direct slice stores into the output VMEM block; the HBM writeback is always the
    # full-block DMA regardless of how the block was filled, so no extra passes are needed.
    out_ref[:, 0:1, :] = prefix_ref[...]
    out_ref[:, 1:1 + n_ctx, :] = jnp.broadcast_to(
        ctx_ref[...][None, :, :], (tile_cls, n_ctx, dim)
    )
    out_ref[:, 1 + n_ctx:, :] = suffix_ref[...]


def _pick_class_tile(n_cls, per_cls_bytes, shared_bytes, budget_bytes):
    """Largest class tile whose double-buffered footprint fits the budget.

    No divisor requirement: the grid uses cdiv and Pallas clips the ragged last tile.
    The tile is also capped so the grid has >= 2 steps (v7x: both TensorCores get work).
    """
    tile = max(1, int((budget_bytes - shared_bytes) // per_cls_bytes))
    tile = min(tile, n_cls)
    if n_cls >= 2:
        tile = min(tile, pl.cdiv(n_cls, 2))
    return max(int(tile), 1)


def vl_prompt_learner_forward(ctx, token_prefix, token_suffix, *, vmem_budget_bytes=16 << 20):
    """Equivalent of VLPromptLearner.forward() for use_prompt_stage=True."""
    n_cls, one, dim = token_prefix.shape
    n_ctx, ctx_dim = ctx.shape
    n_suf = token_suffix.shape[1]
    seq = 1 + n_ctx + n_suf
    assert one == 1 and ctx_dim == dim
    assert token_suffix.shape == (n_cls, n_suf, dim)
    # No silent downcast through out_shape=ctx.dtype: inputs must share one dtype.
    assert token_prefix.dtype == ctx.dtype and token_suffix.dtype == ctx.dtype, (
        "token_prefix/token_suffix dtype must match ctx dtype"
    )

    isz = jnp.dtype(ctx.dtype).itemsize
    # Per class, per grid step: double-buffered prefix + suffix + out blocks (no scratch).
    per_cls_bytes = 2 * (1 + n_suf + seq) * dim * isz
    # Shared ctx block (constant index map -> fetched once, double-buffered).
    shared_bytes = 2 * n_ctx * dim * isz

    tile_cls = _pick_class_tile(n_cls, per_cls_bytes, shared_bytes, vmem_budget_bytes)
    grid = (pl.cdiv(n_cls, tile_cls),)

    # Derive the compiler VMEM limit from the actual footprint (+headroom) so the tile
    # picker and the limit can never disagree; safe on v7x's 64 MiB physical VMEM.
    footprint = tile_cls * per_cls_bytes + shared_bytes
    vmem_limit = int(min(max(footprint + (2 << 20), 4 << 20), 64 << 20))

    out_bytes = n_cls * seq * dim * isz
    in_bytes = (token_prefix.size + ctx.size + token_suffix.size) * isz

    return pl.pallas_call(
        prompt_kernel,
        out_shape=jax.ShapeDtypeStruct((n_cls, seq, dim), ctx.dtype),
        grid_spec=pltpu.PrefetchScalarGridSpec(
            num_scalar_prefetch=0,
            grid=grid,
            in_specs=[
                pl.BlockSpec((tile_cls, 1, dim), lambda i: (i, 0, 0)),      # prefix
                pl.BlockSpec((n_ctx, dim), lambda i: (0, 0)),               # ctx (shared)
                pl.BlockSpec((tile_cls, n_suf, dim), lambda i: (i, 0, 0)),  # suffix
            ],
            out_specs=pl.BlockSpec((tile_cls, seq, dim), lambda i: (i, 0, 0)),
        ),
        compiler_params=pltpu.CompilerParams(
            # Class axis is embarrassingly parallel; grid >= 2 lets v7x's 2 TCs share it.
            dimension_semantics=("parallel",),
            vmem_limit_bytes=vmem_limit,
        ),
        # Zero-FLOP, HBM-bound copy: let XLA overlap it with surrounding compute.
        cost_estimate=pl.CostEstimate(
            flops=0, transcendentals=0, bytes_accessed=in_bytes + out_bytes
        ),
    )(token_prefix, ctx, token_suffix)


if __name__ == "__main__":
    key = jax.random.PRNGKey(0)
    k_ctx, k_pre, k_suf = jax.random.split(key, 3)

    n_suf = SEQ - 1 - N_CTX
    # Deterministic synthetic parameters / buffers (shapes from __init__):
    #   ctx ~ N(0, 0.02)  (nn.init.normal_(ctx_vectors, std=0.02))
    #   token_prefix / token_suffix: frozen CLIP token embeddings (stand-ins).
    ctx = (0.02 * jax.random.normal(k_ctx, (N_CTX, CTX_DIM))).astype(DTYPE)
    token_prefix = jax.random.normal(k_pre, (N_CLS, 1, CTX_DIM)).astype(DTYPE)
    token_suffix = jax.random.normal(k_suf, (N_CLS, n_suf, CTX_DIM)).astype(DTYPE)

    prompts = vl_prompt_learner_forward(ctx, token_prefix, token_suffix)
    prompts = jax.block_until_ready(prompts)

    # Reference (construct_prompts: cat([prefix, ctx.expand, suffix], dim=1)); pure copies,
    # so exact equality is expected.
    ctx_expanded = jnp.broadcast_to(ctx[None, :, :], (N_CLS, N_CTX, CTX_DIM))
    ref = jnp.concatenate([token_prefix, ctx_expanded, token_suffix], axis=1)
    assert prompts.shape == (N_CLS, SEQ, CTX_DIM)
    assert prompts.dtype == ref.dtype
    assert jnp.array_equal(prompts, ref), "mismatch vs reference"

    # TODO(synk): ZS_evaluation / non-prompt-stage branches just return the precomputed
    # `complete_text_embeddings` buffer (identity; no kernel compute to implement).
    print("KERNEL_OK")
</pallas_src>

<mosaic_0001>
module attributes {stable_mosaic.version = 11 : i64} {
  func.func @prompt_kernel(%arg0: i32, %arg1: memref<4x1x128xbf16, #tpu.memory_space<vmem>>, %arg2: memref<4x128xbf16, #tpu.memory_space<vmem>>, %arg3: memref<4x11x128xbf16, #tpu.memory_space<vmem>>, %arg4: memref<4x16x128xbf16, #tpu.memory_space<vmem>>) attributes {dimension_semantics = [#tpu.dimension_semantics<parallel>], iteration_bounds = array<i64: 2>, scalar_prefetch = 0 : i64, scratch_operands = 0 : i64, tpu.core_type = #tpu.core_type<tc>, window_params = [{transform_indices = @transform_0, window_bounds = array<i64: 4, 1, 128>}, {pipeline_mode = #tpu.pipeline_mode<synchronous>, transform_indices = @transform_1, window_bounds = array<i64: 4, 128>}, {transform_indices = @transform_2, window_bounds = array<i64: 4, 11, 128>}, {transform_indices = @transform_3, window_bounds = array<i64: 4, 16, 128>}]} {
    %c0 = arith.constant 0 : index
    %c0_0 = arith.constant 0 : index
    %c0_1 = arith.constant 0 : index
    %0 = vector.load %arg1[%c0, %c0_0, %c0_1] : memref<4x1x128xbf16, #tpu.memory_space<vmem>>, vector<4x1x128xbf16>
    %c0_2 = arith.constant 0 : index
    %c0_3 = arith.constant 0 : index
    %c0_4 = arith.constant 0 : index
    %1 = vector.load %arg4[%c0_2, %c0_3, %c0_4] : memref<4x16x128xbf16, #tpu.memory_space<vmem>>, vector<4x1x128xbf16>
    tpu.vector_store %arg4[%c0_2, %c0_3, %c0_4], %0 {strides = array<i32>} : memref<4x16x128xbf16, #tpu.memory_space<vmem>>, vector<4x1x128xbf16>,
    %c0_5 = arith.constant 0 : index
    %c0_6 = arith.constant 0 : index
    %2 = vector.load %arg2[%c0_5, %c0_6] : memref<4x128xbf16, #tpu.memory_space<vmem>>, vector<4x128xbf16>
    %3 = vector.shape_cast %2 : vector<4x128xbf16> to vector<1x4x128xbf16>
    %4 = vector.shape_cast %3 : vector<1x4x128xbf16> to vector<1x4x128xbf16>
    %5 = vector.broadcast %4 : vector<1x4x128xbf16> to vector<4x4x128xbf16>
    %c0_7 = arith.constant 0 : index
    %c1 = arith.constant 1 : index
    %c0_8 = arith.constant 0 : index
    %6 = vector.load %arg4[%c0_7, %c1, %c0_8] : memref<4x16x128xbf16, #tpu.memory_space<vmem>>, vector<4x4x128xbf16>
    tpu.vector_store %arg4[%c0_7, %c1, %c0_8], %5 {strides = array<i32>} : memref<4x16x128xbf16, #tpu.memory_space<vmem>>, vector<4x4x128xbf16>,
    %c0_9 = arith.constant 0 : index
    %c0_10 = arith.constant 0 : index
    %c0_11 = arith.constant 0 : index
    %7 = vector.load %arg3[%c0_9, %c0_10, %c0_11] : memref<4x11x128xbf16, #tpu.memory_space<vmem>>, vector<4x11x128xbf16>
    %c0_12 = arith.constant 0 : index
    %c5 = arith.constant 5 : index
    %c0_13 = arith.constant 0 : index
    %8 = vector.load %arg4[%c0_12, %c5, %c0_13] : memref<4x16x128xbf16, #tpu.memory_space<vmem>>, vector<4x11x128xbf16>
    tpu.vector_store %arg4[%c0_12, %c5, %c0_13], %7 {strides = array<i32>} : memref<4x16x128xbf16, #tpu.memory_space<vmem>>, vector<4x11x128xbf16>,
    return
  }
  func.func @transform_0(%arg0: i32) -> (i32, i32, i32) {
    %c0_i32 = arith.constant 0 : i32
    %c0_i32_0 = arith.constant 0 : i32
    %c0_i32_1 = arith.constant 0 : i32
    return %arg0, %c0_i32, %c0_i32_0 : i32, i32, i32
  }
  func.func @transform_1(%arg0: i32) -> (i32, i32) {
    %c0_i32 = arith.constant 0 : i32
    %c0_i32_0 = arith.constant 0 : i32
    %c0_i32_1 = arith.constant 0 : i32
    return %c0_i32, %c0_i32_0 : i32, i32
  }
  func.func @transform_2(%arg0: i32) -> (i32, i32, i32) {
    %c0_i32 = arith.constant 0 : i32
    %c0_i32_0 = arith.constant 0 : i32
    %c0_i32_1 = arith.constant 0 : i32
    return %arg0, %c0_i32, %c0_i32_0 : i32, i32, i32
  }
  func.func @transform_3(%arg0: i32) -> (i32, i32, i32) {
    %c0_i32 = arith.constant 0 : i32
    %c0_i32_0 = arith.constant 0 : i32
    %c0_i32_1 = arith.constant 0 : i32
    return %arg0, %c0_i32, %c0_i32_0 : i32, i32, i32
  }
}

</mosaic_0001>

<llo_original>
// kernel: tpu_custom_call.1
$region0: #{tpu_custom_call.1}
  #allocation0 [shape = 'u32[]', space=smem, size = 0x4, offset = 0x4, fixed_abs, tag = 'smem constant byte address 0x4 - core index']
  #allocation1 [shape = 'u32[72,128]{1,0:T(1,128)}', space=vmem, size = 0x9000, scoped, tag = 'internal scratch']
  %s0 = inlined_call_operand.vmem [shape: bf16[8,1,128], index: 0, kind: input, shape index: {}]
  %s1 = inlined_call_operand.vmem [shape: bf16[4,128], index: 1, kind: input, shape index: {}]
  %s2 = inlined_call_operand.vmem [shape: bf16[8,11,128], index: 2, kind: input, shape index: {}]
  %s3 = inlined_call_operand.hbm [shape: bf16[8,16,128], index: 3, kind: output, shape index: {}]
  %s4 = sld [smem:[#allocation0]]
  $region45: #{tpu_custom_call.1} parent=0
    _
  %s6 = ssub.s32 1, %s4
  %s7 = scalar_select 0, %s6, %s4
  $region1: #{tpu_custom_call.1} parent=0
    #allocation2 [shape = 'u8[32768]{0}', space=vmem, size = 0x8000, scoped, tag = 'output window, operand 0']
    #allocation3 [shape = 's32[2]{0}', space=sflag, size = 0x8, scoped, tag = 'scoped memory for tpu_custom_call.1']
    %8 = vsyncpa [#allocation3], 0
    %s9 = scalar_lea.sflag [#allocation3], 1
    %10 = vsyncpa %s9, 0
    loop: start=0, step=1, limit=4
    $region2: #{tpu_custom_call.1} parent=1 // loop_pre_header
      _
    $region3: #{tpu_custom_call.1} parent=1 // loop_header
      %s12 = sphi 0, %s16
      %p13 = scmp.ge.s32.totalorder %s12, 4
      %s22 = sphi 0, %s24
      %s25 = sphi 0, %s22
      %s26 = sphi 0, %s25
      %s42 = sphi 0, %s26
      %s46 = sphi 0, %s46
      %s48 = sphi 0, %s46
      %s49 = sphi 0, %s48
      %s63 = sphi 0, %s49
      %s69 = sphi 0, %s71
      %s72 = sphi 0, %s69
      %s73 = sphi 0, %s72
      %s89 = sphi 0, %s73
      %s95 = sphi 0, %s97
      %s98 = sphi 0, %s95
      %s99 = sphi 0, %s98
      %s115 = sphi 0, %s99
    $region4: #{tpu_custom_call.1} parent=1 // loop_header_branch
      %15 = sbr.rel (%p13) target = $region8
    $region5: #{tpu_custom_call.1} parent=1 // loop_body
      %s17 = ssub.s32 %s12, 1
      %s18 = ssub.s32 %s12, 2
      %s19 = sadd.s32 %s12, 1
      %s20 = ssub.s32 %s12, %s19
      %p21 = scmp.eq.s32.totalorder %s20, 0
      %s23 = sadd.s32 %s22, 1
      %s24 = scalar_select %p21, %s22, %s23
      %p27 = pneg %p21
      %p28 = scmp.eq.s32.totalorder %s12, 1
      %p29 = por %p27, %p28
      %p30 = scmp.ne.s32.totalorder %s22, %s25
      %p31 = scmp.eq.s32.totalorder %s12, 0
      %p32 = por %p30, %p31
      %p33 = scmp.ne.s32.totalorder %s22, %s25
      %p34 = scmp.eq.s32.totalorder %s17, 1
      %p35 = por %p33, %p34
      %p36 = scmp.ne.s32.totalorder %s25, %s26
      %p37 = scmp.eq.s32.totalorder %s17, 0
      %p38 = por %p36, %p37
      %p39 = scmp.ne.s32.totalorder %s25, %s26
      %p40 = scmp.eq.s32.totalorder %s18, 1
      %p41 = por %p39, %p40
      %p43 = scmp.ne.s32.totalorder %s26, %s42
      %p44 = scmp.eq.s32.totalorder %s18, 0
      %p45 = por %p43, %p44
      %s47 = sadd.s32 %s46, 1
      %p50 = scmp.eq.s32.totalorder %s12, 1
      %p51 = scmp.ne.s32.totalorder %s46, %s48
      %p52 = scmp.eq.s32.totalorder %s12, 0
      %p53 = por %p51, %p52
      %p54 = scmp.ne.s32.totalorder %s46, %s48
      %p55 = scmp.eq.s32.totalorder %s17, 1
      %p56 = por %p54, %p55
      %p57 = scmp.ne.s32.totalorder %s48, %s49
      %p58 = scmp.eq.s32.totalorder %s17, 0
      %p59 = por %p57, %p58
      %p60 = scmp.ne.s32.totalorder %s48, %s49
      %p61 = scmp.eq.s32.totalorder %s18, 1
      %p62 = por %p60, %p61
      %p64 = scmp.ne.s32.totalorder %s49, %s63
      %p65 = scmp.eq.s32.totalorder %s18, 0
      %p66 = por %p64, %p65
      %s67 = ssub.s32 %s12, %s19
      %p68 = scmp.eq.s32.totalorder %s67, 0
      %s70 = sadd.s32 %s69, 1
      %s71 = scalar_select %p68, %s69, %s70
      %p74 = pneg %p68
      %p75 = scmp.eq.s32.totalorder %s12, 1
      %p76 = por %p74, %p75
      %p77 = scmp.ne.s32.totalorder %s69, %s72
      %p78 = scmp.eq.s32.totalorder %s12, 0
      %p79 = por %p77, %p78
      %p80 = scmp.ne.s32.totalorder %s69, %s72
      %p81 = scmp.eq.s32.totalorder %s17, 1
      %p82 = por %p80, %p81
      %p83 = scmp.ne.s32.totalorder %s72, %s73
      %p84 = scmp.eq.s32.totalorder %s17, 0
      %p85 = por %p83, %p84
      %p86 = scmp.ne.s32.totalorder %s72, %s73
      %p87 = scmp.eq.s32.totalorder %s18, 1
      %p88 = por %p86, %p87
      %p90 = scmp.ne.s32.totalorder %s73, %s89
      %p91 = scmp.eq.s32.totalorder %s18, 0
      %p92 = por %p90, %p91
      %s93 = ssub.s32 %s12, %s19
      %p94 = scmp.eq.s32.totalorder %s93, 0
      %s96 = sadd.s32 %s95, 1
      %s97 = scalar_select %p94, %s95, %s96
      %p100 = pneg %p94
      %p101 = scmp.eq.s32.totalorder %s12, 1
      %p102 = por %p100, %p101
      %p103 = scmp.ne.s32.totalorder %s95, %s98
      %p104 = scmp.eq.s32.totalorder %s12, 0
      %p105 = por %p103, %p104
      %p106 = scmp.ne.s32.totalorder %s95, %s98
      %p107 = scmp.eq.s32.totalorder %s17, 1
      %p108 = por %p106, %p107
      %p109 = scmp.ne.s32.totalorder %s98, %s99
      %p110 = scmp.eq.s32.totalorder %s17, 0
      %p111 = por %p109, %p110
      %p112 = scmp.ne.s32.totalorder %s98, %s99
      %p113 = scmp.eq.s32.totalorder %s18, 1
      %p114 = por %p112, %p113
      %p116 = scmp.ne.s32.totalorder %s99, %s115
      %p117 = scmp.eq.s32.totalorder %s18, 0
      %p118 = por %p116, %p117
      %p119 = scmp.le.s32.totalorder 1, %s12
      %p120 = scmp.lt.s32.totalorder %s12, 3
      %p121 = pnand %p119, %p120
      %p122 = pneg %p121
      // Predicated region
      $region9: #{tpu_custom_call.1} parent=5 // pred_check
        _
      $region10: #{tpu_custom_call.1} parent=5 // pred_check_branch
        %124 = sbr.rel (%p121) target = $region12
      $region11: #{tpu_custom_call.1} parent=5 // pred_region
        %s125 = ssub.s32 %s12, 1
        // Predicated region
        $region13: #{tpu_custom_call.1} parent=11 // pred_check
          %p126 = pneg %p59
        $region14: #{tpu_custom_call.1} parent=11 // pred_check_branch
          %128 = sbr.rel (%p126) target = $region16
        $region15: #{tpu_custom_call.1} parent=11 // pred_region
          _
        $region16: #{tpu_custom_call.1} parent=11 // pred_fallthru
          _
      $region12: #{tpu_custom_call.1} parent=5 // pred_fallthru
        _
      %p129 = scmp.lt.s32.totalorder %s12, 2
      // Predicated region
      $region17: #{tpu_custom_call.1} parent=5 // pred_check
        %p130 = pneg %p129
      $region18: #{tpu_custom_call.1} parent=5 // pred_check_branch
        %132 = sbr.rel (%p130) target = $region20
      $region19: #{tpu_custom_call.1} parent=5 // pred_region
        // Predicated region
        $region21: #{tpu_custom_call.1} parent=19 // pred_check
          %p133 = pneg %p32
        $region22: #{tpu_custom_call.1} parent=19 // pred_check_branch
          %135 = sbr.rel (%p133) target = $region24
        $region23: #{tpu_custom_call.1} parent=19 // pred_region
          %s136 = smul.u32 4, %s12
          %p137 = scmp.lt.s32.totalorder %s136, 7
          %s138 = scalar_select %p137, %s136, 7
          %s139 = scalar_lea.vmem %s0, %s138
          %s140 = smul.u32 4, %s12
        $region24: #{tpu_custom_call.1} parent=19 // pred_fallthru
          _
        // Predicated region
        $region25: #{tpu_custom_call.1} parent=19 // pred_check
          %p141 = pneg %p79
        $region26: #{tpu_custom_call.1} parent=19 // pred_check_branch
          %143 = sbr.rel (%p141) target = $region28
        $region27: #{tpu_custom_call.1} parent=19 // pred_region
          %s144 = smul.u32 4, %s12
          %p145 = scmp.lt.s32.totalorder %s144, 7
          %s146 = scalar_select %p145, %s144, 7
          %s147 = smul.addr %s146, 2
          %s148 = smul.addr %s147, 4
          %s149 = scalar_lea.vmem %s2, %s148
          %s150 = smul.u32 4, %s12
        $region28: #{tpu_custom_call.1} parent=19 // pred_fallthru
          _
      $region20: #{tpu_custom_call.1} parent=5 // pred_fallthru
        _
      %p151 = scmp.le.s32.totalorder 1, %s12
      %p152 = scmp.lt.s32.totalorder %s12, 3
      %p153 = pnand %p151, %p152
      %p154 = pneg %p153
      // Predicated region
      $region29: #{tpu_custom_call.1} parent=5 // pred_check
        _
      $region30: #{tpu_custom_call.1} parent=5 // pred_check_branch
        %156 = sbr.rel (%p153) target = $region32
      $region31: #{tpu_custom_call.1} parent=5 // pred_region
        %s157 = ssub.s32 %s12, 1
        %s158 = smul.u32 4, %s17
        %p159 = scmp.lt.s32.totalorder %s158, 7
        %s160 = scalar_select %p159, %s158, 7
        %s161 = scalar_lea.vmem %s0, %s160
        %p162 = pneg %p38
        %p163 = pneg %p35
        %p164 = pneg %p59
        %p165 = pneg %p56
        %s166 = smul.u32 4, %s17
        %p167 = scmp.lt.s32.totalorder %s166, 7
        %s168 = scalar_select %p167, %s166, 7
        %s169 = smul.addr %s168, 2
        %s170 = smul.addr %s169, 4
        %s171 = scalar_lea.vmem %s2, %s170
        %p172 = pneg %p85
        %p173 = pneg %p82
        %p174 = pneg %p111
        %p175 = pneg %p108
        %s176 = sand.u32 %s98, 1
        %s177 = scalar_lea.sflag [#allocation3], %s176
        %s178 = sand.u32 %s98, 1
        %s179 = smul.addr %s178, 32
        %s180 = scalar_lea.vmem [#allocation2], %s179
        %s181 = smul.u32 4, %s17
        %p182 = scmp.lt.s32.totalorder %s181, 7
        %s183 = scalar_select %p182, %s181, 7
        %s184 = scalar_lea.vmem %s0, %s183
        %s185 = smul.u32 4, %s17
        %s186 = smul.u32 4, %s17
        %p187 = scmp.lt.s32.totalorder %s186, 7
        %s188 = scalar_select %p187, %s186, 7
        %s189 = smul.addr %s188, 2
        %s190 = smul.addr %s189, 4
        %s191 = scalar_lea.vmem %s2, %s190
        %s192 = smul.u32 4, %s17
        %s193 = smul.u32 4, %s17
        %v194 = vld [vmem:[%s184] sm:$0x1]
        %v195 = vld [vmem:[%s184 + $0x1] sm:$0x1]
        %v196 = vld [vmem:[%s184 + $0x2] sm:$0x1]
        %v197 = vld [vmem:[%s184 + $0x3] sm:$0x1]
        %vm198 = vcmask 1040384
        %vm199 = vsmask.f32 256
        %vm200 = vmand %vm198, %vm199
        %v201 = vld [vmem:[%s180] sm:$0x1]
        %v202 = vsel %vm200, %v194, %v201
        %203 = vst [vmem:[%s180] sm:$0x1] %v202
        %v204 = vld [vmem:[%s180 + $0x8] sm:$0x1]
        %v205 = vsel %vm200, %v195, %v204
        %206 = vst [vmem:[%s180 + $0x8] sm:$0x1] %v205
        %v207 = vld [vmem:[%s180 + $0x10] sm:$0x1]
        %v208 = vsel %vm200, %v196, %v207
        %209 = vst [vmem:[%s180 + $0x10] sm:$0x1] %v208
        %v210 = vld [vmem:[%s180 + $0x18] sm:$0x1]
        %v211 = vsel %vm200, %v197, %v210
        %212 = vst [vmem:[%s180 + $0x18] sm:$0x1] %v211
        %v213 = vld [vmem:[%s1] sm:$0x3]
        %215 = vst [vmem:[#allocation1] ss:$2 sm:$0xff] %v213
        %v216 = vld.sshfl [vmem:[#allocation1] sm:$0xff pattern:$0x75643120]
        %s217 = scalar_lea.vmem [#allocation1], 16
        %218 = vst [vmem:[%s217] ss:$2 sm:$0xff] %v213
        %v219 = vld.sshfl [vmem:[#allocation1 + $0x10] sm:$0xff pattern:$0x75643120]
        %s220 = scalar_lea.vmem [#allocation1], 32
        %221 = vst [vmem:[%s220] ss:$2 sm:$0xff] %v213
        %v222 = vld.sshfl [vmem:[#allocation1 + $0x20] sm:$0xff pattern:$0x75643120]
        %s223 = scalar_lea.vmem [#allocation1], 48
        %224 = vst [vmem:[%s223] ss:$2 sm:$0xff] %v213
        %v225 = vld.sshfl [vmem:[#allocation1 + $0x30] sm:$0xff pattern:$0x75643120]
        %v226 = vshrl.u32 %v216, 16
        %v228 = vrot.slane %v226, 7
        %v229 = vshll.u32 %v216, 16
        %v231 = vor.u32 %v228, %v229
        %v232 = vshrl.u32 %v219, 16
        %v234 = vrot.slane %v232, 7
        %v235 = vshll.u32 %v219, 16
        %v237 = vor.u32 %v234, %v235
        %v238 = vshrl.u32 %v222, 16
        %v240 = vrot.slane %v238, 7
        %v241 = vshll.u32 %v222, 16
        %v243 = vor.u32 %v240, %v241
        %v244 = vshrl.u32 %v225, 16
        %v246 = vrot.slane %v244, 7
        %v247 = vshll.u32 %v225, 16
        %v249 = vor.u32 %v246, %v247
        %vm254 = vcmask 1042432
        %vm255 = vsmask.f32 2306
        %vm256 = vmand %vm254, %vm255
        %v257 = vld [vmem:[%s180] sm:$0x7]
        %v258 = vsel %vm256, %v231, %v257
        %259 = vst [vmem:[%s180] sm:$0x7] %v258
        %v260 = vld [vmem:[%s180 + $0x8] sm:$0x7]
        %v261 = vsel %vm256, %v237, %v260
        %262 = vst [vmem:[%s180 + $0x8] sm:$0x7] %v261
        %v263 = vld [vmem:[%s180 + $0x10] sm:$0x7]
        %v264 = vsel %vm256, %v243, %v263
        %265 = vst [vmem:[%s180 + $0x10] sm:$0x7] %v264
        %v266 = vld [vmem:[%s180 + $0x18] sm:$0x7]
        %v267 = vsel %vm256, %v249, %v266
        %268 = vst [vmem:[%s180 + $0x18] sm:$0x7] %v267
        %v269 = vld [vmem:[%s191] sm:$0xf]
        %v270 = vld [vmem:[%s191 + $0x4] sm:$0x3]
        %v271 = vld [vmem:[%s191 + $0x8] sm:$0xf]
        %v272 = vld [vmem:[%s191 + $0xc] sm:$0x3]
        %v273 = vld [vmem:[%s191 + $0x10] sm:$0xf]
        %v274 = vld [vmem:[%s191 + $0x14] sm:$0x3]
        %v275 = vld [vmem:[%s191 + $0x18] sm:$0xf]
        %v276 = vld [vmem:[%s191 + $0x1c] sm:$0x3]
        %vm277 = vsmask.f32 2304
        %vm278 = vsmask.f32 6416
        %vm279 = vmor %vm277, %vm278
        %v281 = vshrl.u32 %v269, 16
        %v283 = vrot.slane %v281, 5
        %v284 = vshll.u32 %v269, 16
        %v286 = vrot.slane %v284, 6
        %v287 = vor.u32 %v283, %v286
        %v288 = vrot.slane %v287, 4
        %v290 = vshrl.u32 %v270, 16
        %v292 = vrot.slane %v290, 5
        %v293 = vshll.u32 %v270, 16
        %v295 = vrot.slane %v293, 6
        %v296 = vor.u32 %v292, %v295
        %v297 = vsel %vm279, %v288, %v296
        %v299 = vshrl.u32 %v271, 16
        %v301 = vrot.slane %v299, 5
        %v302 = vshll.u32 %v271, 16
        %v304 = vrot.slane %v302, 6
        %v305 = vor.u32 %v301, %v304
        %v306 = vrot.slane %v305, 4
        %v308 = vshrl.u32 %v272, 16
        %v310 = vrot.slane %v308, 5
        %v311 = vshll.u32 %v272, 16
        %v313 = vrot.slane %v311, 6
        %v314 = vor.u32 %v310, %v313
        %v315 = vsel %vm279, %v306, %v314
        %v317 = vshrl.u32 %v273, 16
        %v319 = vrot.slane %v317, 5
        %v320 = vshll.u32 %v273, 16
        %v322 = vrot.slane %v320, 6
        %v323 = vor.u32 %v319, %v322
        %v324 = vrot.slane %v323, 4
        %v326 = vshrl.u32 %v274, 16
        %v328 = vrot.slane %v326, 5
        %v329 = vshll.u32 %v274, 16
        %v331 = vrot.slane %v329, 6
        %v332 = vor.u32 %v328, %v331
        %v333 = vsel %vm279, %v324, %v332
        %v335 = vshrl.u32 %v275, 16
        %v337 = vrot.slane %v335, 5
        %v338 = vshll.u32 %v275, 16
        %v340 = vrot.slane %v338, 6
        %v341 = vor.u32 %v337, %v340
        %v342 = vrot.slane %v341, 4
        %v344 = vshrl.u32 %v276, 16
        %v346 = vrot.slane %v344, 5
        %v347 = vshll.u32 %v276, 16
        %v349 = vrot.slane %v347, 6
        %v350 = vor.u32 %v346, %v349
        %v351 = vsel %vm279, %v342, %v350
        %vm360 = vcmask 1043458
        %vm361 = vsmask.f32 7946
        %vm362 = vmand %vm360, %vm361
        %v363 = vld [vmem:[%s180] sm:$0xc]
        %v364 = vsel %vm362, %v287, %v363
        %365 = vst [vmem:[%s180] sm:$0xc] %v364
        %366 = vst [vmem:[%s180 + $0x4] sm:$0xf] %v297
        %v367 = vld [vmem:[%s180 + $0x8] sm:$0xc]
        %v368 = vsel %vm362, %v305, %v367
        %369 = vst [vmem:[%s180 + $0x8] sm:$0xc] %v368
        %370 = vst [vmem:[%s180 + $0xc] sm:$0xf] %v315
        %v371 = vld [vmem:[%s180 + $0x10] sm:$0xc]
        %v372 = vsel %vm362, %v323, %v371
        %373 = vst [vmem:[%s180 + $0x10] sm:$0xc] %v372
        %374 = vst [vmem:[%s180 + $0x14] sm:$0xf] %v333
        %v375 = vld [vmem:[%s180 + $0x18] sm:$0xc]
        %v376 = vsel %vm362, %v341, %v375
        %377 = vst [vmem:[%s180 + $0x18] sm:$0xc] %v376
        %378 = vst [vmem:[%s180 + $0x1c] sm:$0xf] %v351
        %s379 = sand.u32 %s98, 1
        %s380 = scalar_lea.sflag [#allocation3], %s379
        %s381 = sand.u32 %s98, 1
        %s382 = smul.addr %s381, 32
        %s383 = scalar_lea.vmem [#allocation2], %s382
        // Predicated region
        $region33: #{tpu_custom_call.1} parent=31 // pred_check
          %p384 = pneg %p108
        $region34: #{tpu_custom_call.1} parent=31 // pred_check_branch
          %386 = sbr.rel (%p384) target = $region36
        $region35: #{tpu_custom_call.1} parent=31 // pred_region
          %s387 = smul.u32 4, %s17
          %389 = vsyncadd %s380, 0
          %s390 = smul.addr %s387, 2
          %s391 = smul.addr %s390, 4
          %s392 = scalar_lea.hbm %s3, %s391
          %s393 = sshll.u32 %s383, 4
          %s394 = int_to_ptr.vmem [resolvable:$true] %s393
          %s395 = sshll.u32 %s392, 4
          %s396 = int_to_ptr.hbm [resolvable:$true] %s395
          %401 = dma.vmem_to_hbm [thread:$0]  %s394, 512, %s396, %s380, 64, 64, 4
        $region36: #{tpu_custom_call.1} parent=31 // pred_fallthru
          _
      $region32: #{tpu_custom_call.1} parent=5 // pred_fallthru
        _
      %p402 = scmp.le.s32.totalorder 2, %s12
      // Predicated region
      $region37: #{tpu_custom_call.1} parent=5 // pred_check
        %p403 = pneg %p402
      $region38: #{tpu_custom_call.1} parent=5 // pred_check_branch
        %405 = sbr.rel (%p403) target = $region40
      $region39: #{tpu_custom_call.1} parent=5 // pred_region
        %s406 = ssub.s32 %s12, 2
        // Predicated region
        $region41: #{tpu_custom_call.1} parent=39 // pred_check
          %p407 = pneg %p114
        $region42: #{tpu_custom_call.1} parent=39 // pred_check_branch
          %409 = sbr.rel (%p407) target = $region44
        $region43: #{tpu_custom_call.1} parent=39 // pred_region
          %s410 = sand.u32 %s99, 1
          %s411 = scalar_lea.sflag [#allocation3], %s410
          %s412 = sand.u32 %s99, 1
          %s413 = smul.addr %s412, 32
          %s414 = scalar_lea.vmem [#allocation2], %s413
          %416 = dma.done %s411, 512
        $region44: #{tpu_custom_call.1} parent=39 // pred_fallthru
          _
      $region40: #{tpu_custom_call.1} parent=5 // pred_fallthru
        _
    $region6: #{tpu_custom_call.1} parent=1 // loop_footer
      %s16 = sadd.s32 1, %s12
    $region7: #{tpu_custom_call.1} parent=1 // loop_footer_branch
      %11 = sbr.rel target = $region3
    $region8: #{tpu_custom_call.1} parent=1 // loop_exit
      _
    %417 = vsyncpa [#allocation3], 1
    %s418 = scalar_lea.sflag [#allocation3], 1
    %419 = vsyncpa %s418, 1

</llo_original>
